<compile_context>
chip_gen: v7x
topology: tpu7x:2x2x1
jax: 0.10.0
libtpu: 0.0.40
codegen_flags: <defaults>
</compile_context>

<pallas_src>
from functools import partial

import jax
import jax.numpy as jnp
from jax import lax
from jax.experimental import pallas as pl
from jax.experimental.pallas import tpu as pltpu

C_IN = 3                      # RGB pages
HIDDEN = 32                   # detection head hidden channels
KSIZE = 3                     # 3x3 conv
K_IM2COL = KSIZE * KSIZE * C_IN   # 27
LANE = 128


def _det_head_kernel(p_ref, w3_ref, b3_ref, w1_ref, b1_ref, o_ref):
    """Fused detection head on one pixel tile.

    p_ref:  (1, 27, TILE_P)  im2col patches (mean-subtracted, zero-padded
                             border), pixels on the lane axis.
    w3_ref: (32, 27)         3x3-conv weights with 1/std folded in.
    b3_ref: (32, 1)          3x3-conv bias.
    w1_ref: (32, 1)          1x1-conv weights.
    b1_ref: (1, 1)           1x1-conv bias.
    o_ref:  (1, 1, TILE_P)   sigmoid probability map for this pixel tile.
    """
    patches = p_ref[0]                                     # (27, TILE_P)

    # 3x3 conv (normalization pre-folded): single K=27 MXU matmul, output
    # (HIDDEN, TILE_P) with pixels lane-dense.
    h = jnp.dot(w3_ref[...], patches,
                preferred_element_type=jnp.float32)        # MXU
    h = jnp.maximum(h + b3_ref[...], 0.0)                  # lane-dense ReLU

    # 1x1 conv as a 32-way sublane reduction (keeps the epilogue lane-dense).
    logits = jnp.sum(h * w1_ref[...], axis=0, keepdims=True) + b1_ref[...]

    # sigmoid(x) = 0.5*(tanh(x/2)+1): EUP tanh, no divide, no inf intermediate.
    o_ref[0] = 0.5 * jnp.tanh(0.5 * logits) + 0.5          # (1, TILE_P) store


@partial(jax.jit, static_argnames=("tile_p",))
def detection_head_forward(batch_nchw, params, *, tile_p=8192):
    """Run the fused pre-processing + detection head Pallas kernel.

    batch_nchw: (B, C_IN, H, W) float32 pages in [0, 1].
    returns:    (B, H, W) float32 probability maps.
    """
    B, C, H, W = batch_nchw.shape
    assert C == C_IN
    mean = params["mean"].astype(jnp.float32)
    std = params["std"].astype(jnp.float32)

    # ---- Fold the pre-processor into the conv weights -----------------------
    # normalized = (x - mean) / std; the conv is linear, so dividing the 3x3
    # weights by std (per input channel) and zero-padding the mean-subtracted
    # image reproduces padding=1 conv on the normalized image exactly
    # (border taps contribute 0 in both formulations).
    w3 = params["w3"].astype(jnp.float32)                  # (HIDDEN, C, 3, 3)
    w3_mat = jnp.transpose(w3 / std[None, :, None, None], (0, 2, 3, 1))
    w3_mat = w3_mat.reshape(HIDDEN, K_IM2COL)              # k = (dy*3+dx)*C + c
    b3 = params["b3"].astype(jnp.float32).reshape(HIDDEN, 1)
    w1 = params["w1"].astype(jnp.float32).reshape(HIDDEN, 1)
    b1 = params["b1"].astype(jnp.float32).reshape(1, 1)

    # ---- im2col prologue (XLA): (B, 27, H*W), pixels contiguous on last dim -
    xs = batch_nchw.astype(jnp.float32) - mean[None, :, None, None]
    xp = jnp.pad(xs, ((0, 0), (0, 0), (1, 1), (1, 1)))     # zero pad = pad=1
    patches = jnp.stack(
        [xp[:, :, dy:dy + H, dx:dx + W]
         for dy in range(KSIZE) for dx in range(KSIZE)],
        axis=1)                                            # (B, 9, C, H, W)
    patches = patches.reshape(B, K_IM2COL, H * W)

    # ---- pixel tiling --------------------------------------------------------
    n_pix = H * W
    tp = max(LANE, min(int(tile_p), pl.cdiv(n_pix, LANE) * LANE))
    tp = (tp // LANE) * LANE                               # lane-multiple tile
    n_tiles = pl.cdiv(n_pix, tp)
    pix_pad = n_tiles * tp
    if pix_pad != n_pix:
        patches = jnp.pad(patches, ((0, 0), (0, 0), (0, pix_pad - n_pix)))

    out = pl.pallas_call(
        _det_head_kernel,
        out_shape=jax.ShapeDtypeStruct((B, 1, pix_pad), jnp.float32),
        grid=(B, n_tiles),
        in_specs=[
            pl.BlockSpec((1, K_IM2COL, tp), lambda b, t: (b, 0, t)),
            pl.BlockSpec((HIDDEN, K_IM2COL), lambda b, t: (0, 0)),
            pl.BlockSpec((HIDDEN, 1), lambda b, t: (0, 0)),
            pl.BlockSpec((HIDDEN, 1), lambda b, t: (0, 0)),
            pl.BlockSpec((1, 1), lambda b, t: (0, 0)),
        ],
        out_specs=pl.BlockSpec((1, 1, tp), lambda b, t: (b, 0, t)),
        compiler_params=pltpu.CompilerParams(
            dimension_semantics=("parallel", "parallel")),
    )(patches, w3_mat, b3, w1, b1)

    return out[:, 0, :n_pix].reshape(B, H, W)


class PreProcessor:
    """Groups same-sized pages into batches (resize omitted: pages already
    match the model input size)."""

    def __init__(self, batch_size: int = 2):
        self.batch_size = batch_size

    def __call__(self, pages):
        batches = []
        for i in range(0, len(pages), self.batch_size):
            chunk = [jnp.asarray(p, jnp.float32)
                     for p in pages[i:i + self.batch_size]]
            batches.append(jnp.stack(chunk, axis=0))       # (b, C, H, W)
        return batches


class DetectionModel:
    """Tiny DBNet-style detection head backed by the Pallas kernel.
    eval() is implicit: no dropout / BN state."""

    def __init__(self, params, tile_p: int = 8192):
        self.params = params
        self.tile_p = tile_p

    def __name__(self):
        return "db_mini"

    def __call__(self, batch, return_preds: bool = True, **kwargs):
        prob_maps = detection_head_forward(batch, self.params,
                                           tile_p=self.tile_p)
        # "preds": one array per page in the batch.
        return {"preds": [prob_maps[i] for i in range(prob_maps.shape[0])]}


class DetectionPredictor:
    """JAX mirror of doctr's DetectionPredictor.forward semantics."""

    def __init__(self, pre_processor=None, model=None):
        self.pre_processor = pre_processor
        self.model = model

    def __call__(self, pages, **kwargs):
        if self.model.__name__() != "textron":
            if any(page.ndim != 3 for page in pages):
                raise ValueError(
                    "incorrect input shape: all pages are expected to be "
                    "multi-channel 2D images.")
        elif not isinstance(pages, list):
            raise TypeError(
                "If the model is textron the input should be a list of image names")
        processed_batches = self.pre_processor(pages)
        if self.model.__name__() != "textron":
            predicted_batches = [
                self.model(batch, return_preds=True, **kwargs)["preds"]
                for batch in processed_batches
            ]
            return [pred for batch in predicted_batches for pred in batch]
        else:
            predicted_batches = [self.model(batch) for batch in processed_batches]
            return [pred for batch in predicted_batches for pred in batch]


def init_params(key):
    k3, k1 = jax.random.split(key)
    return {
        # doctr default normalization stats
        "mean": jnp.array([0.798, 0.785, 0.772], jnp.float32),
        "std": jnp.array([0.264, 0.2749, 0.287], jnp.float32),
        # torch-style conv params
        "w3": 0.1 * jax.random.normal(k3, (HIDDEN, C_IN, KSIZE, KSIZE),
                                      jnp.float32),
        "b3": jnp.zeros((HIDDEN,), jnp.float32),
        "w1": 0.1 * jax.random.normal(k1, (1, HIDDEN, 1, 1), jnp.float32),
        "b1": jnp.zeros((1,), jnp.float32),
    }


def _reference_forward(batch, params):
    """Pure-JAX reference of the same forward (for correctness check)."""
    mean = params["mean"].reshape(1, C_IN, 1, 1)
    std = params["std"].reshape(1, C_IN, 1, 1)
    xn = (batch - mean) / std
    h = lax.conv_general_dilated(
        xn, params["w3"], window_strides=(1, 1), padding=((1, 1), (1, 1)),
        dimension_numbers=("NCHW", "OIHW", "NCHW"),
        precision=lax.Precision.HIGHEST)
    h = jnp.maximum(h + params["b3"].reshape(1, HIDDEN, 1, 1), 0.0)
    logits = lax.conv_general_dilated(
        h, params["w1"], window_strides=(1, 1), padding=((0, 0), (0, 0)),
        dimension_numbers=("NCHW", "OIHW", "NCHW"),
        precision=lax.Precision.HIGHEST)
    logits = logits + params["b1"].reshape(1, 1, 1, 1)
    return jax.nn.sigmoid(logits)[:, 0]


if __name__ == "__main__":
    key = jax.random.PRNGKey(0)
    pkey, *page_keys = jax.random.split(key, 5)

    H = Wd = 16
    # 4 pages, CHW (as PyTorch would see them), values in [0, 1]
    pages = [jax.random.uniform(k, (C_IN, H, Wd), jnp.float32)
             for k in page_keys]

    params = init_params(pkey)
    predictor = DetectionPredictor(
        pre_processor=PreProcessor(batch_size=2),
        model=DetectionModel(params, tile_p=128),   # 128-pixel tiles -> 2 tiles/page
    )

    preds = predictor(pages)                        # list of (H, W) prob maps
    for p in preds:
        jax.block_until_ready(p)

    assert len(preds) == len(pages)
    assert all(p.shape == (H, Wd) for p in preds)
    assert all(bool(jnp.all((p >= 0.0) & (p <= 1.0))) for p in preds)

    ref = _reference_forward(jnp.stack(pages), params)
    got = jnp.stack(preds)
    max_err = float(jnp.max(jnp.abs(got - ref)))
    assert max_err < 2e-2, f"max |pallas - ref| = {max_err}"

    print("KERNEL_OK")
</pallas_src>

<mosaic_0001>
module attributes {stable_mosaic.version = 11 : i64} {
  func.func @_det_head_kernel(%arg0: i32, %arg1: i32, %arg2: memref<1x27x128xf32, #tpu.memory_space<vmem>>, %arg3: memref<32x27xf32, #tpu.memory_space<vmem>>, %arg4: memref<32x1xf32, #tpu.memory_space<vmem>>, %arg5: memref<32x1xf32, #tpu.memory_space<vmem>>, %arg6: memref<1x1xf32, #tpu.memory_space<vmem>>, %arg7: memref<1x1x128xf32, #tpu.memory_space<vmem>>) attributes {dimension_semantics = [#tpu.dimension_semantics<parallel>, #tpu.dimension_semantics<parallel>], iteration_bounds = array<i64: 2, 2>, scalar_prefetch = 0 : i64, scratch_operands = 0 : i64, tpu.core_type = #tpu.core_type<tc>, window_params = [{transform_indices = @transform_0, window_bounds = array<i64: 1, 27, 128>}, {pipeline_mode = #tpu.pipeline_mode<synchronous>, transform_indices = @transform_1, window_bounds = array<i64: 32, 27>}, {pipeline_mode = #tpu.pipeline_mode<synchronous>, transform_indices = @transform_2, window_bounds = array<i64: 32, 1>}, {pipeline_mode = #tpu.pipeline_mode<synchronous>, transform_indices = @transform_3, window_bounds = array<i64: 32, 1>}, {pipeline_mode = #tpu.pipeline_mode<synchronous>, transform_indices = @transform_4, window_bounds = array<i64: 1, 1>}, {transform_indices = @transform_5, window_bounds = array<i64: 1, 1, 128>}]} {
    %c0 = arith.constant 0 : index
    %c0_0 = arith.constant 0 : index
    %c0_1 = arith.constant 0 : index
    %0 = vector.load %arg2[%c0, %c0_0, %c0_1] : memref<1x27x128xf32, #tpu.memory_space<vmem>>, vector<1x27x128xf32>
    %1 = vector.shape_cast %0 : vector<1x27x128xf32> to vector<27x128xf32>
    %c0_2 = arith.constant 0 : index
    %c0_3 = arith.constant 0 : index
    %2 = vector.load %arg3[%c0_2, %c0_3] : memref<32x27xf32, #tpu.memory_space<vmem>>, vector<32x27xf32>
    %cst = arith.constant dense<0.000000e+00> : vector<32x128xf32>
    %3 = tpu.matmul %2, %1, %cst {dimension_numbers = #tpu.dot_dimension_numbers<[1], [0], [0], [1], [0, 0, 1, 1], [], []>} : vector<32x27xf32>, vector<27x128xf32>, vector<32x128xf32> -> vector<32x128xf32>
    %c0_4 = arith.constant 0 : index
    %c0_5 = arith.constant 0 : index
    %4 = vector.load %arg4[%c0_4, %c0_5] : memref<32x1xf32, #tpu.memory_space<vmem>>, vector<32x1xf32>
    %5 = vector.broadcast %4 : vector<32x1xf32> to vector<32x128xf32>
    %6 = arith.addf %3, %5 : vector<32x128xf32>
    %cst_6 = arith.constant 0.000000e+00 : f32
    %7 = vector.broadcast %cst_6 : f32 to vector<32x128xf32>
    %8 = arith.maximumf %6, %7 : vector<32x128xf32>
    %c0_7 = arith.constant 0 : index
    %c0_8 = arith.constant 0 : index
    %9 = vector.load %arg5[%c0_7, %c0_8] : memref<32x1xf32, #tpu.memory_space<vmem>>, vector<32x1xf32>
    %10 = vector.broadcast %9 : vector<32x1xf32> to vector<32x128xf32>
    %11 = arith.mulf %8, %10 : vector<32x128xf32>
    %cst_9 = arith.constant dense<0.000000e+00> : vector<128xf32>
    %12 = vector.multi_reduction <add>, %11, %cst_9 [0] : vector<32x128xf32> to vector<128xf32>
    %13 = vector.shape_cast %12 : vector<128xf32> to vector<1x128xf32>
    %c0_10 = arith.constant 0 : index
    %c0_11 = arith.constant 0 : index
    %14 = vector.load %arg6[%c0_10, %c0_11] : memref<1x1xf32, #tpu.memory_space<vmem>>, vector<1x1xf32>
    %15 = vector.broadcast %14 : vector<1x1xf32> to vector<1x128xf32>
    %16 = arith.addf %13, %15 : vector<1x128xf32>
    %cst_12 = arith.constant 5.000000e-01 : f32
    %17 = vector.broadcast %cst_12 : f32 to vector<1x128xf32>
    %18 = arith.mulf %17, %16 : vector<1x128xf32>
    %19 = math.tanh %18 : vector<1x128xf32>
    %cst_13 = arith.constant 5.000000e-01 : f32
    %20 = vector.broadcast %cst_13 : f32 to vector<1x128xf32>
    %21 = arith.mulf %20, %19 : vector<1x128xf32>
    %cst_14 = arith.constant 5.000000e-01 : f32
    %22 = vector.broadcast %cst_14 : f32 to vector<1x128xf32>
    %23 = arith.addf %21, %22 : vector<1x128xf32>
    %c0_15 = arith.constant 0 : index
    %c0_16 = arith.constant 0 : index
    %c0_17 = arith.constant 0 : index
    %24 = vector.load %arg7[%c0_15, %c0_16, %c0_17] : memref<1x1x128xf32, #tpu.memory_space<vmem>>, vector<1x1x128xf32>
    %25 = vector.shape_cast %24 : vector<1x1x128xf32> to vector<1x128xf32>
    %26 = vector.shape_cast %23 : vector<1x128xf32> to vector<1x1x128xf32>
    tpu.vector_store %arg7[%c0_15, %c0_16, %c0_17], %26 {strides = array<i32>} : memref<1x1x128xf32, #tpu.memory_space<vmem>>, vector<1x1x128xf32>,
    return
  }
  func.func @transform_0(%arg0: i32, %arg1: i32) -> (i32, i32, i32) {
    %c0_i32 = arith.constant 0 : i32
    %c0_i32_0 = arith.constant 0 : i32
    return %arg0, %c0_i32, %arg1 : i32, i32, i32
  }
  func.func @transform_1(%arg0: i32, %arg1: i32) -> (i32, i32) {
    %c0_i32 = arith.constant 0 : i32
    %c0_i32_0 = arith.constant 0 : i32
    %c0_i32_1 = arith.constant 0 : i32
    return %c0_i32, %c0_i32_0 : i32, i32
  }
  func.func @transform_2(%arg0: i32, %arg1: i32) -> (i32, i32) {
    %c0_i32 = arith.constant 0 : i32
    %c0_i32_0 = arith.constant 0 : i32
    %c0_i32_1 = arith.constant 0 : i32
    return %c0_i32, %c0_i32_0 : i32, i32
  }
  func.func @transform_3(%arg0: i32, %arg1: i32) -> (i32, i32) {
    %c0_i32 = arith.constant 0 : i32
    %c0_i32_0 = arith.constant 0 : i32
    %c0_i32_1 = arith.constant 0 : i32
    return %c0_i32, %c0_i32_0 : i32, i32
  }
  func.func @transform_4(%arg0: i32, %arg1: i32) -> (i32, i32) {
    %c0_i32 = arith.constant 0 : i32
    %c0_i32_0 = arith.constant 0 : i32
    %c0_i32_1 = arith.constant 0 : i32
    return %c0_i32, %c0_i32_0 : i32, i32
  }
  func.func @transform_5(%arg0: i32, %arg1: i32) -> (i32, i32, i32) {
    %c0_i32 = arith.constant 0 : i32
    %c0_i32_0 = arith.constant 0 : i32
    return %arg0, %c0_i32, %arg1 : i32, i32, i32
  }
}

</mosaic_0001>

<llo_original>
// kernel: squeeze.1
$region0: #{squeeze.1}
  %s0 = inlined_call_operand.vmem [shape: f32[2,256], index: 0, kind: input, shape index: {}]
  %s1 = inlined_call_operand.hbm [shape: f32[2,16,16], index: 1, kind: output, shape index: {}]
  $region1: #{squeeze.1} parent=0
    #allocation0 [shape = 'u8[16384]{0}', space=vmem, size = 0x4000, scoped, tag = 'operand span for operand 1']
    #allocation1 [shape = 's32[1]{0}', space=sflag, size = 0x4, scoped, tag = 'scoped memory for squeeze.1']
    #allocation2 [shape = 'u8[8192]{0}', space=vmem, size = 0x2000, scoped, tag = 'scoped mem for input reshape']
    %2 = vsyncpa [#allocation1], 0
    %s4 = sshllo.u32 0, 2
    %s5 = scalar_lea.vmem %s0, 2
    %v6 = vld [vmem:[%s5] sm:%s4]
    %s7 = scalar_lea.vmem [#allocation2], 8
    %8 = vst [vmem:[%s7] sm:%s4] %v6
    %v9 = vld [vmem:[%s0] sm:%s4]
    %10 = vst [vmem:[#allocation2] sm:%s4] %v9
    %v11 = vld [vmem:[#allocation2] sm:$0x3]
    %vm12 = vcmask 130048
    %13 = vst.msk [vmem:[#allocation0] ss:$16 sm:$0x3] %vm12, %v11
    %s14 = scalar_lea.vmem [#allocation2], 8
    %v15 = vld [vmem:[%s14] sm:$0x3]
    %vm16 = vcmask 130048
    %s17 = scalar_lea.vmem [#allocation0], 8
    %18 = vst.msk [vmem:[%s17] ss:$16 sm:$0x3] %vm16, %v15
    %v19 = vld.sshfl [vmem:[#allocation2] sm:$0xff pattern:$0x99999180]
    %20 = vrot.lane.b32.xlu0 %v19, 112
    %v21 = vpop.permute.xlu0 %20
    %vm22 = vcmask 130048
    %s23 = scalar_lea.vmem [#allocation0], 1
    %24 = vst.msk [vmem:[%s23] ss:$8 sm:$0xf] %vm22, %v21
    %v25 = vld.sshfl [vmem:[#allocation2] sm:$0xff pattern:$0x99999180]
    %26 = vrot.lane.b32.xlu0 %v25, 96
    %v27 = vpop.permute.xlu0 %26
    %vm28 = vcmask 130048
    %s29 = scalar_lea.vmem [#allocation0], 2
    %30 = vst.msk [vmem:[%s29] ss:$8 sm:$0xf] %vm28, %v27
    %v31 = vld.sshfl [vmem:[#allocation2] sm:$0xff pattern:$0x99999180]
    %32 = vrot.lane.b32.xlu0 %v31, 80
    %v33 = vpop.permute.xlu0 %32
    %vm34 = vcmask 130048
    %s35 = scalar_lea.vmem [#allocation0], 3
    %36 = vst.msk [vmem:[%s35] ss:$8 sm:$0xf] %vm34, %v33
    %v37 = vld.sshfl [vmem:[#allocation2] sm:$0xff pattern:$0x99999180]
    %38 = vrot.lane.b32.xlu0 %v37, 64
    %v39 = vpop.permute.xlu0 %38
    %vm40 = vcmask 130048
    %s41 = scalar_lea.vmem [#allocation0], 4
    %42 = vst.msk [vmem:[%s41] ss:$8 sm:$0xf] %vm40, %v39
    %v43 = vld.sshfl [vmem:[#allocation2] sm:$0xff pattern:$0x99999180]
    %44 = vrot.lane.b32.xlu0 %v43, 48
    %v45 = vpop.permute.xlu0 %44
    %vm46 = vcmask 130048
    %s47 = scalar_lea.vmem [#allocation0], 5
    %48 = vst.msk [vmem:[%s47] ss:$8 sm:$0xf] %vm46, %v45
    %v49 = vld.sshfl [vmem:[#allocation2] sm:$0xff pattern:$0x99999180]
    %50 = vrot.lane.b32.xlu0 %v49, 32
    %v51 = vpop.permute.xlu0 %50
    %vm52 = vcmask 130048
    %s53 = scalar_lea.vmem [#allocation0], 6
    %54 = vst.msk [vmem:[%s53] ss:$8 sm:$0xf] %vm52, %v51
    %v55 = vld.sshfl [vmem:[#allocation2] sm:$0xff pattern:$0x99999180]
    %56 = vrot.lane.b32.xlu0 %v55, 16
    %v57 = vpop.permute.xlu0 %56
    %vm58 = vcmask 130048
    %s59 = scalar_lea.vmem [#allocation0], 7
    %60 = vst.msk [vmem:[%s59] ss:$8 sm:$0xf] %vm58, %v57
    %s62 = ssub.s32 512, 512
    %63 = vsyncadd [#allocation1], %s62
    %s65 = sshll.u32 [#allocation0], 4
    %s66 = int_to_ptr.vmem [resolvable:$true] %s65
    %68 = dma.vmem_to_hbm [thread:$0]  %s66, 512, %s1, [#allocation1]
    %69 = dma.done [#allocation1], 512
    %70 = vsyncpa [#allocation1], 1

// kernel: detection_head_forward.1
$region0: #{detection_head_forward.1}
  #allocation0 [shape = 'u32[]', space=smem, size = 0x4, offset = 0x4, fixed_abs, tag = 'smem constant byte address 0x4 - core index']
  #allocation1 [shape = 'u32[144,128]{1,0:T(1,128)}', space=vmem, size = 0x12000, scoped, tag = 'internal scratch']
  #allocation2 [shape = 'f32[1,1]{1,0:T(1,128)S(1)}', space=vmem, size = 0x200, scoped, tag = 'scoped memory for detection_head_forward.1']
  %s0 = inlined_call_operand.vmem [shape: f32[2,27,256], index: 0, kind: input, shape index: {}]
  %s1 = inlined_call_operand.vmem [shape: f32[32,27], index: 1, kind: input, shape index: {}]
  %s2 = inlined_call_operand.vmem [shape: f32[32,1], index: 2, kind: input, shape index: {}]
  %s3 = inlined_call_operand.vmem [shape: f32[32,1], index: 3, kind: input, shape index: {}]
  %s4 = inlined_call_operand.<no memory space> [shape: f32[1,1], index: 4, kind: input, shape index: {}]
  %s5 = inlined_call_operand.vmem [shape: f32[2,1,256], index: 5, kind: output, shape index: {}]
  %s6 = sld [smem:[#allocation0]]
  $region91: #{detection_head_forward.1} parent=0
    _
  %s8 = ssub.s32 1, %s6
  %s9 = scalar_select 0, %s8, %s6
  %v10 = vstv %s4
  %11 = vst [vmem:[#allocation2] sm:$0x1] %v10
  $region1: #{detection_head_forward.1} parent=0
    #allocation3 [shape = 'u8[32768]{0}', space=vmem, size = 0x8000, scoped, tag = 'input window, operand 0']
    loop: start=0, step=1, limit=6
    $region2: #{detection_head_forward.1} parent=1 // loop_pre_header
      _
    $region3: #{detection_head_forward.1} parent=1 // loop_header
      %s13 = sphi 0, %s17
      %p14 = scmp.ge.s32.totalorder %s13, 6
      %s20 = sphi 0, %s32
      %s21 = sphi 0, %s28
      %s22 = sphi 0, %s20
      %s23 = sphi 0, %s21
      %s24 = sphi 0, %s22
      %s25 = sphi 0, %s23
      %s37 = sphi 0, %s39
      %s40 = sphi 0, %s37
      %s41 = sphi 0, %s40
      %s57 = sphi 0, %s41
      %s61 = sphi 0, %s61
      %s63 = sphi 0, %s61
      %s64 = sphi 0, %s63
      %s78 = sphi 0, %s64
      %s82 = sphi 0, %s82
      %s84 = sphi 0, %s82
      %s85 = sphi 0, %s84
      %s99 = sphi 0, %s85
      %s103 = sphi 0, %s103
      %s105 = sphi 0, %s103
      %s106 = sphi 0, %s105
      %s120 = sphi 0, %s106
      %s124 = sphi 0, %s124
      %s126 = sphi 0, %s124
      %s127 = sphi 0, %s126
      %s141 = sphi 0, %s127
      %s149 = sphi 0, %s151
      %s152 = sphi 0, %s149
      %s153 = sphi 0, %s152
      %s169 = sphi 0, %s153
    $region4: #{detection_head_forward.1} parent=1 // loop_header_branch
      %16 = sbr.rel (%p14) target = $region8
    $region5: #{detection_head_forward.1} parent=1 // loop_body
      %s18 = ssub.s32 %s13, 1
      %s19 = ssub.s32 %s13, 2
      %s26 = sadd.s32 1, %s21
      %p27 = scmp.ge.s32.totalorder %s26, 2
      %s28 = scalar_select %p27, 0, %s26
      %s29 = sadd.s32 1, %s20
      %s30 = scalar_select %p27, %s29, %s20
      %p31 = scmp.ge.s32.totalorder %s30, 2
      %s32 = scalar_select %p31, 0, %s30
      %s33 = ssub.s32 %s20, %s32
      %s34 = ssub.s32 %s21, %s28
      %s35 = sor.u32 %s33, %s34
      %p36 = scmp.eq.s32.totalorder %s35, 0
      %s38 = sadd.s32 %s37, 1
      %s39 = scalar_select %p36, %s37, %s38
      %p42 = pneg %p36
      %p43 = scmp.eq.s32.totalorder %s13, 3
      %p44 = por %p42, %p43
      %p45 = scmp.ne.s32.totalorder %s37, %s40
      %p46 = scmp.eq.s32.totalorder %s13, 0
      %p47 = por %p45, %p46
      %p48 = scmp.ne.s32.totalorder %s37, %s40
      %p49 = scmp.eq.s32.totalorder %s18, 3
      %p50 = por %p48, %p49
      %p51 = scmp.ne.s32.totalorder %s40, %s41
      %p52 = scmp.eq.s32.totalorder %s18, 0
      %p53 = por %p51, %p52
      %p54 = scmp.ne.s32.totalorder %s40, %s41
      %p55 = scmp.eq.s32.totalorder %s19, 3
      %p56 = por %p54, %p55
      %p58 = scmp.ne.s32.totalorder %s41, %s57
      %p59 = scmp.eq.s32.totalorder %s19, 0
      %p60 = por %p58, %p59
      %s62 = sadd.s32 %s61, 1
      %p65 = scmp.eq.s32.totalorder %s13, 3
      %p66 = scmp.ne.s32.totalorder %s61, %s63
      %p67 = scmp.eq.s32.totalorder %s13, 0
      %p68 = por %p66, %p67
      %p69 = scmp.ne.s32.totalorder %s61, %s63
      %p70 = scmp.eq.s32.totalorder %s18, 3
      %p71 = por %p69, %p70
      %p72 = scmp.ne.s32.totalorder %s63, %s64
      %p73 = scmp.eq.s32.totalorder %s18, 0
      %p74 = por %p72, %p73
      %p75 = scmp.ne.s32.totalorder %s63, %s64
      %p76 = scmp.eq.s32.totalorder %s19, 3
      %p77 = por %p75, %p76
      %p79 = scmp.ne.s32.totalorder %s64, %s78
      %p80 = scmp.eq.s32.totalorder %s19, 0
      %p81 = por %p79, %p80
      %s83 = sadd.s32 %s82, 1
      %p86 = scmp.eq.s32.totalorder %s13, 3
      %p87 = scmp.ne.s32.totalorder %s82, %s84
      %p88 = scmp.eq.s32.totalorder %s13, 0
      %p89 = por %p87, %p88
      %p90 = scmp.ne.s32.totalorder %s82, %s84
      %p91 = scmp.eq.s32.totalorder %s18, 3
      %p92 = por %p90, %p91
      %p93 = scmp.ne.s32.totalorder %s84, %s85
      %p94 = scmp.eq.s32.totalorder %s18, 0
      %p95 = por %p93, %p94
      %p96 = scmp.ne.s32.totalorder %s84, %s85
      %p97 = scmp.eq.s32.totalorder %s19, 3
      %p98 = por %p96, %p97
      %p100 = scmp.ne.s32.totalorder %s85, %s99
      %p101 = scmp.eq.s32.totalorder %s19, 0
      %p102 = por %p100, %p101
      %s104 = sadd.s32 %s103, 1
      %p107 = scmp.eq.s32.totalorder %s13, 3
      %p108 = scmp.ne.s32.totalorder %s103, %s105
      %p109 = scmp.eq.s32.totalorder %s13, 0
      %p110 = por %p108, %p109
      %p111 = scmp.ne.s32.totalorder %s103, %s105
      %p112 = scmp.eq.s32.totalorder %s18, 3
      %p113 = por %p111, %p112
      %p114 = scmp.ne.s32.totalorder %s105, %s106
      %p115 = scmp.eq.s32.totalorder %s18, 0
      %p116 = por %p114, %p115
      %p117 = scmp.ne.s32.totalorder %s105, %s106
      %p118 = scmp.eq.s32.totalorder %s19, 3
      %p119 = por %p117, %p118
      %p121 = scmp.ne.s32.totalorder %s106, %s120
      %p122 = scmp.eq.s32.totalorder %s19, 0
      %p123 = por %p121, %p122
      %s125 = sadd.s32 %s124, 1
      %p128 = scmp.eq.s32.totalorder %s13, 3
      %p129 = scmp.ne.s32.totalorder %s124, %s126
      %p130 = scmp.eq.s32.totalorder %s13, 0
      %p131 = por %p129, %p130
      %p132 = scmp.ne.s32.totalorder %s124, %s126
      %p133 = scmp.eq.s32.totalorder %s18, 3
      %p134 = por %p132, %p133
      %p135 = scmp.ne.s32.totalorder %s126, %s127
      %p136 = scmp.eq.s32.totalorder %s18, 0
      %p137 = por %p135, %p136
      %p138 = scmp.ne.s32.totalorder %s126, %s127
      %p139 = scmp.eq.s32.totalorder %s19, 3
      %p140 = por %p138, %p139
      %p142 = scmp.ne.s32.totalorder %s127, %s141
      %p143 = scmp.eq.s32.totalorder %s19, 0
      %p144 = por %p142, %p143
      %s145 = ssub.s32 %s20, %s32
      %s146 = ssub.s32 %s21, %s28
      %s147 = sor.u32 %s145, %s146
      %p148 = scmp.eq.s32.totalorder %s147, 0
      %s150 = sadd.s32 %s149, 1
      %s151 = scalar_select %p148, %s149, %s150
      %p154 = pneg %p148
      %p155 = scmp.eq.s32.totalorder %s13, 3
      %p156 = por %p154, %p155
      %p157 = scmp.ne.s32.totalorder %s149, %s152
      %p158 = scmp.eq.s32.totalorder %s13, 0
      %p159 = por %p157, %p158
      %p160 = scmp.ne.s32.totalorder %s149, %s152
      %p161 = scmp.eq.s32.totalorder %s18, 3
      %p162 = por %p160, %p161
      %p163 = scmp.ne.s32.totalorder %s152, %s153
      %p164 = scmp.eq.s32.totalorder %s18, 0
      %p165 = por %p163, %p164
      %p166 = scmp.ne.s32.totalorder %s152, %s153
      %p167 = scmp.eq.s32.totalorder %s19, 3
      %p168 = por %p166, %p167
      %p170 = scmp.ne.s32.totalorder %s153, %s169
      %p171 = scmp.eq.s32.totalorder %s19, 0
      %p172 = por %p170, %p171
      %p173 = scmp.le.s32.totalorder 1, %s13
      %p174 = scmp.lt.s32.totalorder %s13, 5
      %p175 = pnand %p173, %p174
      %p176 = pneg %p175
      // Predicated region
      $region9: #{detection_head_forward.1} parent=5 // pred_check
        _
      $region10: #{detection_head_forward.1} parent=5 // pred_check_branch
        %178 = sbr.rel (%p175) target = $region12
      $region11: #{detection_head_forward.1} parent=5 // pred_region
        %s179 = ssub.s32 %s13, 1
        // Predicated region
        $region13: #{detection_head_forward.1} parent=11 // pred_check
          %p180 = pneg %p74
        $region14: #{detection_head_forward.1} parent=11 // pred_check_branch
          %182 = sbr.rel (%p180) target = $region16
        $region15: #{detection_head_forward.1} parent=11 // pred_region
          _
        $region16: #{detection_head_forward.1} parent=11 // pred_fallthru
          _
        // Predicated region
        $region17: #{detection_head_forward.1} parent=11 // pred_check
          %p183 = pneg %p95
        $region18: #{detection_head_forward.1} parent=11 // pred_check_branch
          %185 = sbr.rel (%p183) target = $region20
        $region19: #{detection_head_forward.1} parent=11 // pred_region
          _
        $region20: #{detection_head_forward.1} parent=11 // pred_fallthru
          _
        // Predicated region
        $region21: #{detection_head_forward.1} parent=11 // pred_check
          %p186 = pneg %p116
        $region22: #{detection_head_forward.1} parent=11 // pred_check_branch
          %188 = sbr.rel (%p186) target = $region24
        $region23: #{detection_head_forward.1} parent=11 // pred_region
          _
        $region24: #{detection_head_forward.1} parent=11 // pred_fallthru
          _
        // Predicated region
        $region25: #{detection_head_forward.1} parent=11 // pred_check
          %p189 = pneg %p137
        $region26: #{detection_head_forward.1} parent=11 // pred_check_branch
          %191 = sbr.rel (%p189) target = $region28
        $region27: #{detection_head_forward.1} parent=11 // pred_region
          _
        $region28: #{detection_head_forward.1} parent=11 // pred_fallthru
          _
      $region12: #{detection_head_forward.1} parent=5 // pred_fallthru
        _
      %p192 = scmp.lt.s32.totalorder %s13, 4
      // Predicated region
      $region29: #{detection_head_forward.1} parent=5 // pred_check
        %p193 = pneg %p192
      $region30: #{detection_head_forward.1} parent=5 // pred_check_branch
        %195 = sbr.rel (%p193) target = $region32
      $region31: #{detection_head_forward.1} parent=5 // pred_region
        // Predicated region
        $region33: #{detection_head_forward.1} parent=31 // pred_check
          %p196 = pneg %p47
        $region34: #{detection_head_forward.1} parent=31 // pred_check_branch
          %198 = sbr.rel (%p196) target = $region36
        $region35: #{detection_head_forward.1} parent=31 // pred_region
          %s199 = sand.u32 %s37, 1
          %s200 = sand.u32 %s37, 1
          %s201 = smul.addr %s200, 32
          %s202 = scalar_lea.vmem [#allocation3], %s201
          %s203 = smul.addr %s20, 8
          %s204 = sadd.s32 %s21, %s203
          %s205 = smul.addr %s204, 8
          %s206 = scalar_lea.vmem %s0, %s205
          // Predicated region
          $region37: #{detection_head_forward.1} parent=35 // pred_check
            _
          $region38: #{detection_head_forward.1} parent=35 // pred_check_branch
            %208 = sbr.rel (0) target = $region40
          $region39: #{detection_head_forward.1} parent=35 // pred_region
            // Predicated region
            $region41: #{detection_head_forward.1} parent=39 // pred_check
              _
            $region42: #{detection_head_forward.1} parent=39 // pred_check_branch
              %210 = sbr.rel (0) target = $region44
            $region43: #{detection_head_forward.1} parent=39 // pred_region
              // Predicated region
              $region56: #{detection_head_forward.1} parent=43 // pred_check
                _
              $region57: #{detection_head_forward.1} parent=43 // pred_check_branch
                %231 = sbr.rel (0) target = $region59
              $region58: #{detection_head_forward.1} parent=43 // pred_region
                loop: start=0, step=1, limit=1
                $region60: #{detection_head_forward.1} parent=58 // loop_pre_header
                  _
                $region61: #{detection_head_forward.1} parent=58 // loop_header
                  %s233 = sphi 0, %s237
                  %p234 = scmp.ge.s32.totalorder %s233, 1
                  %s238 = sphi %s206, %s206
                  %s239 = sphi %s202, %s202
                $region62: #{detection_head_forward.1} parent=58 // loop_header_branch
                  %236 = sbr.rel (%p234) target = $region66
                $region63: #{detection_head_forward.1} parent=58 // loop_body
                  %v240 = vld [vmem:[%s238] sm:$0xff]
                  %241 = vst [vmem:[%s239] sm:$0xff] %v240
                  %v242 = vld [vmem:[%s238 + $0x10] sm:$0xff]
                  %243 = vst [vmem:[%s239 + $0x8] sm:$0xff] %v242
                  %v244 = vld [vmem:[%s238 + $0x20] sm:$0xff]
                  %245 = vst [vmem:[%s239 + $0x10] sm:$0xff] %v244
                  %v246 = vld [vmem:[%s238 + $0x30] sm:$0xff]
                  %247 = vst [vmem:[%s239 + $0x18] sm:$0xff] %v246
                $region64: #{detection_head_forward.1} parent=58 // loop_footer
                  %s237 = sadd.s32 1, %s233
                $region65: #{detection_head_forward.1} parent=58 // loop_footer_branch
                  %232 = sbr.rel target = $region61
                $region66: #{detection_head_forward.1} parent=58 // loop_exit
                  _
              $region59: #{detection_head_forward.1} parent=43 // pred_fallthru
                _
              // Predicated region
              $region67: #{detection_head_forward.1} parent=43 // pred_check
                _
              $region68: #{detection_head_forward.1} parent=43 // pred_check_branch
                %249 = sbr.rel target = $region70
              $region69: #{detection_head_forward.1} parent=43 // pred_region
                _
              $region70: #{detection_head_forward.1} parent=43 // pred_fallthru
                _
            $region44: #{detection_head_forward.1} parent=39 // pred_fallthru
              _
            // Predicated region
            $region45: #{detection_head_forward.1} parent=39 // pred_check
              _
            $region46: #{detection_head_forward.1} parent=39 // pred_check_branch
              %212 = sbr.rel target = $region48
            $region47: #{detection_head_forward.1} parent=39 // pred_region
              loop: start=0, step=1, limit=1
              $region49: #{detection_head_forward.1} parent=47 // loop_pre_header
                _
              $region50: #{detection_head_forward.1} parent=47 // loop_header
                %s215 = sphi 0, %s219
                %p216 = scmp.ge.s32.totalorder %s215, 1
                %s220 = sphi %s206, %s206
                %s221 = sphi %s202, %s202
              $region51: #{detection_head_forward.1} parent=47 // loop_header_branch
                %218 = sbr.rel (%p216) target = $region55
              $region52: #{detection_head_forward.1} parent=47 // loop_body
                %v222 = vld [vmem:[%s220] sm:$0xff]
                %223 = vst [vmem:[%s221] sm:$0xff] %v222
                %v224 = vld [vmem:[%s220 + $0x10] sm:$0xff]
                %225 = vst [vmem:[%s221 + $0x8] sm:$0xff] %v224
                %v226 = vld [vmem:[%s220 + $0x20] sm:$0xff]
                %227 = vst [vmem:[%s221 + $0x10] sm:$0xff] %v226
                %v228 = vld [vmem:[%s220 + $0x30] sm:$0xff]
                %229 = vst [vmem:[%s221 + $0x18] sm:$0xff] %v228
              $region53: #{detection_head_forward.1} parent=47 // loop_footer
                %s219 = sadd.s32 1, %s215
              $region54: #{detection_head_forward.1} parent=47 // loop_footer_branch
                %214 = sbr.rel target = $region50
              $region55: #{detection_head_forward.1} parent=47 // loop_exit
                _
            $region48: #{detection_head_forward.1} parent=39 // pred_fallthru
              _
          $region40: #{detection_head_forward.1} parent=35 // pred_fallthru
            _
          %250 = vnop
        $region36: #{detection_head_forward.1} parent=31 // pred_fallthru
          _
      $region32: #{detection_head_forward.1} parent=5 // pred_fallthru
        _
      %p251 = scmp.le.s32.totalorder 1, %s13
      %p252 = scmp.lt.s32.totalorder %s13, 5
      %p253 = pnand %p251, %p252
      %p254 = pneg %p253
      // Predicated region
      $region71: #{detection_head_forward.1} parent=5 // pred_check
        _
      $region72: #{detection_head_forward.1} parent=5 // pred_check_branch
        %256 = sbr.rel (%p253) target = $region74
      $region73: #{detection_head_forward.1} parent=5 // pred_region
        %s257 = ssub.s32 %s13, 1
        %s258 = sand.u32 %s40, 1
        %s259 = sand.u32 %s40, 1
        %s260 = smul.addr %s259, 32
        %s261 = scalar_lea.vmem [#allocation3], %s260
        // Predicated region
        $region75: #{detection_head_forward.1} parent=73 // pred_check
          %p262 = pneg %p53
        $region76: #{detection_head_forward.1} parent=73 // pred_check_branch
          %264 = sbr.rel (%p262) target = $region78
        $region77: #{detection_head_forward.1} parent=73 // pred_region
          _
        $region78: #{detection_head_forward.1} parent=73 // pred_fallthru
          _
        %s265 = sand.u32 %s40, 1
        %s266 = sand.u32 %s40, 1
        %s267 = smul.addr %s266, 32
        %s268 = scalar_lea.vmem [#allocation3], %s267
        %p269 = pneg %p53
        %p270 = pneg %p50
        %p271 = pneg %p74
        %p272 = pneg %p71
        %p273 = pneg %p95
        %p274 = pneg %p92
        %p275 = pneg %p116
        %p276 = pneg %p113
        %p277 = pneg %p137
        %p278 = pneg %p134
        %p279 = pneg %p165
        %p280 = pneg %p162
        %p281 = scmp.lt.s32.totalorder %s22, 1
        %s282 = scalar_select %p281, %s22, 1
        %p283 = scmp.lt.s32.totalorder %s23, 1
        %s284 = scalar_select %p283, %s23, 1
        %s285 = smul.addr %s282, 2
        %s286 = sadd.s32 %s284, %s285
        %s287 = scalar_lea.vmem %s5, %s286
        %p288 = scmp.lt.s32.totalorder %s22, 1
        %s289 = scalar_select %p288, %s22, 1
        %p290 = scmp.lt.s32.totalorder %s23, 1
        %s291 = scalar_select %p290, %s23, 1
        %s292 = smul.addr %s289, 2
        %s293 = sadd.s32 %s291, %s292
        %s294 = scalar_lea.vmem %s5, %s293
        %v295 = vld [vmem:[%s261] sm:$0xff]
        %v296 = vld [vmem:[%s261 + $0x8] sm:$0xff]
        %v297 = vld [vmem:[%s261 + $0x10] sm:$0xff]
        %v298 = vld [vmem:[%s261 + $0x18] sm:$0x7]
        %v299 = vld [vmem:[%s1] sm:$0xff]
        %v300 = vld [vmem:[%s1 + $0x8] sm:$0xff]
        %v301 = vld [vmem:[%s1 + $0x10] sm:$0xff]
        %v302 = vld [vmem:[%s1 + $0x18] sm:$0xff]
        %v303 = vld [vmem:[%s2] sm:$0xff]
        %v304 = vld [vmem:[%s2 + $0x8] sm:$0xff]
        %v305 = vld [vmem:[%s2 + $0x10] sm:$0xff]
        %v306 = vld [vmem:[%s2 + $0x18] sm:$0xff]
        %308 = vset.pattern.permute.xlu0 0
        %309 = vperm.xlu0 %308, %v303
        %v310 = vpop.permute.xlu0 %309
        %313 = vset.pattern.permute.xlu0 0
        %314 = vperm.xlu0 %313, %v304
        %v315 = vpop.permute.xlu0 %314
        %318 = vset.pattern.permute.xlu0 0
        %319 = vperm.xlu0 %318, %v305
        %v320 = vpop.permute.xlu0 %319
        %323 = vset.pattern.permute.xlu0 0
        %324 = vperm.xlu0 %323, %v306
        %v325 = vpop.permute.xlu0 %324
        %vm327 = vcmask 220160
        %v329 = vsel %vm327, %v299, 0
        %v332 = vsel %vm327, %v300, 0
        %v335 = vsel %vm327, %v301, 0
        %v338 = vsel %vm327, %v302, 0
        %vm340 = vcmask 1042432
        %v342 = vsel %vm340, %v298, 0
        %344 = vmatprep.subr.mxu0 0.0
        %345 = vmatpush1.msra.mxu0 %v295
        %346 = vmatprep.subr.mxu0 0.0
        %347 = vmatpush1.msra.mxu0 %v296
        %348 = vmatprep.subr.mxu0 0.0
        %349 = vmatpush1.msra.mxu0 %v297
        %350 = vmatprep.subr.mxu0 0.0
        %351 = vmatpush1.msra.mxu0 %v342
        %352 = vmatprep.subr.mxu0 0.0
        %353 = vmatpush1.msra.mxu0 0.0
        %354 = vmatprep.subr.mxu0 0.0
        %355 = vmatpush1.msra.mxu0 0.0
        %356 = vmatprep.subr.mxu0 0.0
        %357 = vmatpush1.msra.mxu0 0.0
        %358 = vmatprep.subr.mxu0 0.0
        %359 = vmatpush1.msra.mxu0 0.0
        %360 = vmatprep.subr.mxu0 0.0
        %361 = vmatpush1.msra.mxu0 0.0
        %362 = vmatprep.subr.mxu0 0.0
        %363 = vmatpush1.msra.mxu0 0.0
        %364 = vmatprep.subr.mxu0 0.0
        %365 = vmatpush1.msra.mxu0 0.0
        %366 = vmatprep.subr.mxu0 0.0
        %367 = vmatpush1.msra.mxu0 0.0
        %368 = vmatprep.subr.mxu0 0.0
        %369 = vmatpush1.msra.mxu0 0.0
        %370 = vmatprep.subr.mxu0 0.0
        %371 = vmatpush1.msra.mxu0 0.0
        %372 = vmatprep.subr.mxu0 0.0
        %373 = vmatpush1.msra.mxu0 0.0
        %374 = vmatprep.subr.mxu0 0.0
        %375 = vmatpush1.msra.mxu0 0.0
        %376 = vmatprep.subr.mxu0 0.0
        %377 = vmatpush1.msra.mxu0 0.0
        %378 = vmatprep.subr.mxu0 0.0
        %379 = vmatpush1.msra.mxu0 0.0
        %380 = vmatprep.subr.mxu0 0.0
        %381 = vmatpush1.msra.mxu0 0.0
        %382 = vmatprep.subr.mxu0 0.0
        %383 = vmatpush1.msra.mxu0 0.0
        %384 = vmatprep.subr.mxu0 0.0
        %385 = vmatpush1.msra.mxu0 0.0
        %386 = vmatprep.subr.mxu0 0.0
        %387 = vmatpush1.msra.mxu0 0.0
        %388 = vmatprep.subr.mxu0 0.0
        %389 = vmatpush1.msra.mxu0 0.0
        %390 = vmatprep.subr.mxu0 0.0
        %391 = vmatpush1.msra.mxu0 0.0
        %392 = vmatprep.subr.mxu0 0.0
        %393 = vmatpush1.msra.mxu0 0.0
        %394 = vmatprep.subr.mxu0 0.0
        %395 = vmatpush1.msra.mxu0 0.0
        %396 = vmatprep.subr.mxu0 0.0
        %397 = vmatpush1.msra.mxu0 0.0
        %398 = vmatprep.subr.mxu0 0.0
        %399 = vmatpush1.msra.mxu0 0.0
        %400 = vmatprep.subr.mxu0 0.0
        %401 = vmatpush1.msra.mxu0 0.0
        %402 = vmatprep.subr.mxu0 0.0
        %403 = vmatpush1.msra.mxu0 0.0
        %404 = vmatprep.subr.mxu0 0.0
        %405 = vmatpush1.msra.mxu0 0.0
        %406 = vmatprep.subr.mxu0 0.0
        %407 = vmatpush1.msra.mxu0 0.0
        %408 = vmatprep.mubr.f32.mxu0 0.0
        %409 = vmatmul.mubr.f32.gmra.mrb[0].mxu0 %v329
        %v410 = vpop.f32.mrb[0].mxu0
        %v411 = vadd.f32 %v310, %v410
        %v412 = vpop.f32.mrb[0].mxu0
        %413 = vmatprep.mubr.f32.mxu0 0.0
        %414 = vmatmul.mubr.f32.gmra.mrb[0].mxu0 %v332
        %v415 = vpop.f32.mrb[0].mxu0
        %v416 = vadd.f32 %v315, %v415
        %v417 = vpop.f32.mrb[0].mxu0
        %418 = vmatprep.mubr.f32.mxu0 0.0
        %419 = vmatmul.mubr.f32.gmra.mrb[0].mxu0 %v335
        %v420 = vpop.f32.mrb[0].mxu0
        %v421 = vadd.f32 %v320, %v420
        %v422 = vpop.f32.mrb[0].mxu0
        %423 = vmatprep.mubr.f32.mxu0 0.0
        %424 = vmatmul.mubr.f32.gmra.mrb[0].mxu0 %v338
        %v425 = vpop.f32.mrb[0].mxu0
        %v426 = vadd.f32 %v325, %v425
        %v427 = vpop.f32.mrb[0].mxu0
        %428 = vdwg.mxu0
        %v429 = vmax.f32 %v411, 0.0
        %v430 = vmax.f32 %v416, 0.0
        %v431 = vmax.f32 %v421, 0.0
        %v432 = vmax.f32 %v426, 0.0
        %v433 = vld [vmem:[%s3] sm:$0xff]
        %v434 = vld [vmem:[%s3 + $0x8] sm:$0xff]
        %v435 = vld [vmem:[%s3 + $0x10] sm:$0xff]
        %v436 = vld [vmem:[%s3 + $0x18] sm:$0xff]
        %438 = vset.pattern.permute.xlu0 0
        %439 = vperm.xlu0 %438, %v433
        %v440 = vpop.permute.xlu0 %439
        %443 = vset.pattern.permute.xlu0 0
        %444 = vperm.xlu0 %443, %v434
        %v445 = vpop.permute.xlu0 %444
        %448 = vset.pattern.permute.xlu0 0
        %449 = vperm.xlu0 %448, %v435
        %v450 = vpop.permute.xlu0 %449
        %453 = vset.pattern.permute.xlu0 0
        %454 = vperm.xlu0 %453, %v436
        %v455 = vpop.permute.xlu0 %454
        %v457 = vmul.f32 %v429, %v440
        %v458 = vmul.f32 %v430, %v445
        %v459 = vmul.f32 %v431, %v450
        %v460 = vmul.f32 %v432, %v455
        %v461 = vadd.f32 %v457, %v458
        %v462 = vadd.f32 %v461, %v459
        %v463 = vadd.f32 %v462, %v460
        %v464 = vrot.slane %v463, 4
        %v465 = vadd.f32 %v463, %v464
        %v466 = vrot.slane %v465, 2
        %v467 = vadd.f32 %v465, %v466
        %v468 = vrot.slane %v467, 1
        %v469 = vadd.f32 %v467, %v468
        %v470 = vld [vmem:[#allocation2] sm:$0x1]
        %472 = vset.pattern.permute.xlu0 0
        %473 = vperm.xlu0 %472, %v470
        %v474 = vpop.permute.xlu0 %473
        %v476 = vlaneseq
        %v477 = vshrl.u32 %v476, 7
        %v478 = vsub.s32 0, %v477
        %v479 = vrot.slane %v474, %v478
        %v480 = vadd.f32 %v469, %v479
        %v481 = vmul.f32 %v480, 0.5
        %v482 = vtanh.pop %v481
        %v483 = vmul.f32 %v482, 0.5
        %v484 = vadd.f32 %v483, 0.5
        %485 = vst [vmem:[%s294] sm:$0x1] %v484
        %p486 = scmp.lt.s32.totalorder %s22, 1
        %s487 = scalar_select %p486, %s22, 1
        %p488 = scmp.lt.s32.totalorder %s23, 1
        %s489 = scalar_select %p488, %s23, 1
        %s490 = smul.addr %s487, 2
        %s491 = sadd.s32 %s489, %s490
        %s492 = scalar_lea.vmem %s5, %s491
        // Predicated region
        $region79: #{detection_head_forward.1} parent=73 // pred_check
          %p493 = pneg %p162
        $region80: #{detection_head_forward.1} parent=73 // pred_check_branch
          %495 = sbr.rel (%p493) target = $region82
        $region81: #{detection_head_forward.1} parent=73 // pred_region
          _
        $region82: #{detection_head_forward.1} parent=73 // pred_fallthru
          _
      $region74: #{detection_head_forward.1} parent=5 // pred_fallthru
        _
      %p496 = scmp.le.s32.totalorder 2, %s13
      // Predicated region
      $region83: #{detection_head_forward.1} parent=5 // pred_check
        %p497 = pneg %p496
      $region84: #{detection_head_forward.1} parent=5 // pred_check_branch
        %499 = sbr.rel (%p497) target = $region86
      $region85: #{detection_head_forward.1} parent=5 // pred_region
        %s500 = ssub.s32 %s13, 2
        // Predicated region
        $region87: #{detection_head_forward.1} parent=85 // pred_check
          %p501 = pneg %p168
        $region88: #{detection_head_forward.1} parent=85 // pred_check_branch
          %503 = sbr.rel (%p501) target = $region90
        $region89: #{detection_head_forward.1} parent=85 // pred_region
          %p504 = scmp.lt.s32.totalorder %s24, 1
          %s505 = scalar_select %p504, %s24, 1
          %p506 = scmp.lt.s32.totalorder %s25, 1
          %s507 = scalar_select %p506, %s25, 1
          %s508 = smul.addr %s505, 2
          %s509 = sadd.s32 %s507, %s508
          %s510 = scalar_lea.vmem %s5, %s509
        $region90: #{detection_head_forward.1} parent=85 // pred_fallthru
          _
      $region86: #{detection_head_forward.1} parent=5 // pred_fallthru
        _
    $region6: #{detection_head_forward.1} parent=1 // loop_footer
      %s17 = sadd.s32 1, %s13
    $region7: #{detection_head_forward.1} parent=1 // loop_footer_branch
      %12 = sbr.rel target = $region3
    $region8: #{detection_head_forward.1} parent=1 // loop_exit
      _

</llo_original>
